<compile_context>
chip_gen: v7x
topology: tpu7x:2x2x1
jax: 0.10.0
libtpu: 0.0.40
codegen_flags: <defaults>
</compile_context>

<pallas_src>
import functools

import jax
import jax.numpy as jnp
from jax.experimental import pallas as pl
from jax.experimental.pallas import tpu as pltpu


def _focal_loss_kernel(logits_ref, tgt_ref, out_ref, *, alpha, gamma,
                       ignore_index, hw, tile_hw):
    j = pl.program_id(1)

    # Zero the per-batch vector accumulator on the first reduction step.
    @pl.when(j == 0)
    def _():
        out_ref[...] = jnp.zeros_like(out_ref)

    x = logits_ref[0].astype(jnp.float32)        # (C, T)  classes on sublanes
    t = tgt_ref[0]                               # (1, T)  int32

    # Column validity: inside the real spatial extent AND not ignore_index.
    col = j * tile_hw + jax.lax.broadcasted_iota(jnp.int32, t.shape, 1)
    valid = jnp.logical_and(col < hw, t != ignore_index)      # (1, T)

    # Numerically-stable log-sum-exp over the class (sublane) axis.
    m = jnp.max(x, axis=0, keepdims=True)                      # (1, T)
    lse = m + jnp.log(jnp.sum(jnp.exp(x - m), axis=0, keepdims=True))

    # Gather the target-class logit via a one-hot compare (no gather op).
    cls = jax.lax.broadcasted_iota(jnp.int32, x.shape, 0)       # (C, T)
    x_t = jnp.sum(jnp.where(cls == t, x, 0.0), axis=0, keepdims=True)

    ce = jnp.where(valid, lse - x_t, 0.0)                       # (1, T)

    # Trace-time specialized focal modulation.
    if gamma == 0.0:
        focal = ce if alpha == 1.0 else alpha * ce
    else:
        one_m_pt = jnp.maximum(1.0 - jnp.exp(-ce), 0.0)  # clamp: no NaN from pow
        if float(gamma).is_integer() and 0.0 < gamma <= 4.0:
            mod = one_m_pt
            for _ in range(int(gamma) - 1):
                mod = mod * one_m_pt
        else:
            mod = one_m_pt ** gamma
        focal = alpha * mod * ce
    focal = jnp.where(valid, focal, 0.0)

    # Vector (lane-wise) accumulation into the resident output block.
    out_ref[...] = out_ref[...] + focal[None]


def _pick_tile_hw(hw, c, itemsize):
    # Keep the double-buffered logits footprint ~8 MiB (fits default scoped
    # VMEM on v5e/v6e/v7x), lane-aligned, and no larger than needed.
    t = (8 * 1024 * 1024) // max(1, 2 * c * itemsize)
    t = max(512, min(8192, t))
    t = min(t, pl.cdiv(hw, 128) * 128)
    return max(128, (t // 128) * 128)


def focal_loss(inputs, targets, *, alpha=1.0, gamma=0.0, size_average=True,
               ignore_index=255, tile_hw=None):
    """inputs: (N, C, H, W) float logits; targets: (N, H, W) integer labels."""
    N, C, H, W = inputs.shape
    HW = H * W
    P = N * HW

    # Free reshapes only -- NCHW stays in place (no transpose, no pad).
    logits = inputs.reshape(N, C, HW)
    tgt = targets.reshape(N, 1, HW).astype(jnp.int32)

    if tile_hw is None:
        tile_hw = _pick_tile_hw(HW, C, jnp.dtype(inputs.dtype).itemsize)
    n_tiles = pl.cdiv(HW, tile_hw)

    kernel = functools.partial(
        _focal_loss_kernel, alpha=float(alpha), gamma=float(gamma),
        ignore_index=int(ignore_index), hw=HW, tile_hw=tile_hw)

    partials = pl.pallas_call(
        kernel,
        out_shape=jax.ShapeDtypeStruct((N, 1, tile_hw), jnp.float32),
        grid_spec=pltpu.PrefetchScalarGridSpec(
            num_scalar_prefetch=0,
            grid=(N, n_tiles),
            in_specs=[
                pl.BlockSpec((1, C, tile_hw), lambda n, j: (n, 0, j)),
                pl.BlockSpec((1, 1, tile_hw), lambda n, j: (n, 0, j)),
            ],
            out_specs=pl.BlockSpec((1, 1, tile_hw), lambda n, j: (n, 0, 0)),
        ),
        compiler_params=pltpu.CompilerParams(
            dimension_semantics=("parallel", "arbitrary")),
    )(logits, tgt)

    total = jnp.sum(partials)
    if size_average:
        # torch .mean() on the unreduced CE divides by ALL positions,
        # including ignore_index ones (matches the reference FocalLoss).
        return total / jnp.float32(P)
    return total


def _reference(x, targets, *, alpha, gamma, ignore_index, size_average):
    N, C, H, W = x.shape
    logits = jnp.transpose(x, (0, 2, 3, 1)).reshape(-1, C)
    t = targets.reshape(-1)
    lse = jax.scipy.special.logsumexp(logits, axis=-1)
    x_t = jnp.take_along_axis(logits, jnp.clip(t, 0, C - 1)[:, None],
                              axis=-1)[:, 0]
    valid = t != ignore_index
    ce = jnp.where(valid, lse - x_t, 0.0)
    pt = jnp.exp(-ce)
    focal = jnp.where(valid, alpha * (1.0 - pt) ** gamma * ce, 0.0)
    return jnp.mean(focal) if size_average else jnp.sum(focal)


if __name__ == "__main__":
    key = jax.random.PRNGKey(0)
    k_x, k_t, k_m = jax.random.split(key, 3)

    N, C, H, W = 2, 4, 16, 16
    x = jax.random.normal(k_x, (N, C, H, W), dtype=jnp.float32)
    targets = jax.random.randint(k_t, (N, H, W), 0, C, dtype=jnp.int32)
    # Sprinkle in some ignore_index positions.
    ignore_mask = jax.random.bernoulli(k_m, 0.1, (N, H, W))
    targets = jnp.where(ignore_mask, 255, targets)

    ok = True
    for gamma, size_avg in ((0.0, True), (2.0, False)):
        loss = focal_loss(x, targets, alpha=1.0, gamma=gamma,
                          size_average=size_avg, ignore_index=255)
        jax.block_until_ready(loss)
        ref = _reference(x, targets, alpha=1.0, gamma=gamma,
                         ignore_index=255, size_average=size_avg)
        if not jnp.allclose(loss, ref, rtol=1e-5, atol=1e-6):
            ok = False
            print("MISMATCH gamma=", gamma, loss, ref)

    assert ok
    print("KERNEL_OK")
</pallas_src>

<mosaic_0001>
module attributes {stable_mosaic.version = 11 : i64} {
  func.func @_focal_loss_kernel(%arg0: i32, %arg1: i32, %arg2: memref<1x4x256xf32, #tpu.memory_space<vmem>>, %arg3: memref<1x1x256xi32, #tpu.memory_space<vmem>>, %arg4: memref<1x1x256xf32, #tpu.memory_space<vmem>>) attributes {dimension_semantics = [#tpu.dimension_semantics<parallel>, #tpu.dimension_semantics<arbitrary>], iteration_bounds = array<i64: 2, 1>, scalar_prefetch = 0 : i64, scratch_operands = 0 : i64, tpu.core_type = #tpu.core_type<tc>, window_params = [{transform_indices = @transform_0, window_bounds = array<i64: 1, 4, 256>}, {transform_indices = @transform_1, window_bounds = array<i64: 1, 1, 256>}, {transform_indices = @transform_2, window_bounds = array<i64: 1, 1, 256>}]} {
    %c0_i32 = arith.constant 0 : i32
    %0 = arith.cmpi eq, %arg1, %c0_i32 : i32
    %1 = arith.extui %0 : i1 to i32
    %c0_i32_0 = arith.constant 0 : i32
    %2 = arith.cmpi ne, %1, %c0_i32_0 : i32
    scf.if %2 {
      %cst_18 = arith.constant 0.000000e+00 : f32
      %41 = vector.broadcast %cst_18 : f32 to vector<1x1x256xf32>
      %c0_19 = arith.constant 0 : index
      %c0_20 = arith.constant 0 : index
      %c0_21 = arith.constant 0 : index
      %42 = vector.load %arg4[%c0_19, %c0_20, %c0_21] : memref<1x1x256xf32, #tpu.memory_space<vmem>>, vector<1x1x256xf32>
      tpu.vector_store %arg4[%c0_19, %c0_20, %c0_21], %41 {strides = array<i32>} : memref<1x1x256xf32, #tpu.memory_space<vmem>>, vector<1x1x256xf32>,
    } else {
    }
    %c0 = arith.constant 0 : index
    %c0_1 = arith.constant 0 : index
    %c0_2 = arith.constant 0 : index
    %3 = vector.load %arg2[%c0, %c0_1, %c0_2] : memref<1x4x256xf32, #tpu.memory_space<vmem>>, vector<1x4x256xf32>
    %4 = vector.shape_cast %3 : vector<1x4x256xf32> to vector<4x256xf32>
    %c0_3 = arith.constant 0 : index
    %c0_4 = arith.constant 0 : index
    %c0_5 = arith.constant 0 : index
    %5 = vector.load %arg3[%c0_3, %c0_4, %c0_5] : memref<1x1x256xi32, #tpu.memory_space<vmem>>, vector<1x1x256xi32>
    %6 = vector.shape_cast %5 : vector<1x1x256xi32> to vector<1x256xi32>
    %c256_i32 = arith.constant 256 : i32
    %7 = arith.muli %arg1, %c256_i32 : i32
    %8 = tpu.iota {dimensions = array<i32: 1>} : vector<1x256xi32>
    %9 = vector.broadcast %7 : i32 to vector<1x256xi32>
    %10 = arith.addi %9, %8 : vector<1x256xi32>
    %c256_i32_6 = arith.constant 256 : i32
    %11 = vector.broadcast %c256_i32_6 : i32 to vector<1x256xi32>
    %12 = arith.cmpi slt, %10, %11 : vector<1x256xi32>
    %c255_i32 = arith.constant 255 : i32
    %13 = vector.broadcast %c255_i32 : i32 to vector<1x256xi32>
    %14 = arith.cmpi ne, %6, %13 : vector<1x256xi32>
    %15 = arith.andi %12, %14 : vector<1x256xi1>
    %cst = arith.constant dense<0xFF800000> : vector<256xf32>
    %16 = vector.multi_reduction <maximumf>, %4, %cst [0] : vector<4x256xf32> to vector<256xf32>
    %17 = vector.shape_cast %16 : vector<256xf32> to vector<1x256xf32>
    %18 = vector.broadcast %17 : vector<1x256xf32> to vector<4x256xf32>
    %19 = arith.subf %4, %18 : vector<4x256xf32>
    %20 = math.exp %19 : vector<4x256xf32>
    %cst_7 = arith.constant dense<0.000000e+00> : vector<256xf32>
    %21 = vector.multi_reduction <add>, %20, %cst_7 [0] : vector<4x256xf32> to vector<256xf32>
    %22 = vector.shape_cast %21 : vector<256xf32> to vector<1x256xf32>
    %23 = math.log %22 : vector<1x256xf32>
    %24 = arith.addf %17, %23 : vector<1x256xf32>
    %25 = tpu.iota {dimensions = array<i32: 0>} : vector<4x256xi32>
    %26 = vector.broadcast %6 : vector<1x256xi32> to vector<4x256xi32>
    %27 = arith.cmpi eq, %25, %26 : vector<4x256xi32>
    %cst_8 = arith.constant 0.000000e+00 : f32
    %28 = vector.broadcast %cst_8 : f32 to vector<4x256xf32>
    %29 = arith.select %27, %4, %28 : vector<4x256xi1>, vector<4x256xf32>
    %cst_9 = arith.constant dense<0.000000e+00> : vector<256xf32>
    %30 = vector.multi_reduction <add>, %29, %cst_9 [0] : vector<4x256xf32> to vector<256xf32>
    %31 = vector.shape_cast %30 : vector<256xf32> to vector<1x256xf32>
    %32 = arith.subf %24, %31 : vector<1x256xf32>
    %cst_10 = arith.constant 0.000000e+00 : f32
    %33 = vector.broadcast %cst_10 : f32 to vector<1x256xf32>
    %34 = arith.select %15, %32, %33 : vector<1x256xi1>, vector<1x256xf32>
    %cst_11 = arith.constant 0.000000e+00 : f32
    %35 = vector.broadcast %cst_11 : f32 to vector<1x256xf32>
    %36 = arith.select %15, %34, %35 : vector<1x256xi1>, vector<1x256xf32>
    %c0_12 = arith.constant 0 : index
    %c0_13 = arith.constant 0 : index
    %c0_14 = arith.constant 0 : index
    %37 = vector.load %arg4[%c0_12, %c0_13, %c0_14] : memref<1x1x256xf32, #tpu.memory_space<vmem>>, vector<1x1x256xf32>
    %38 = vector.shape_cast %36 : vector<1x256xf32> to vector<1x1x256xf32>
    %39 = arith.addf %37, %38 : vector<1x1x256xf32>
    %c0_15 = arith.constant 0 : index
    %c0_16 = arith.constant 0 : index
    %c0_17 = arith.constant 0 : index
    %40 = vector.load %arg4[%c0_15, %c0_16, %c0_17] : memref<1x1x256xf32, #tpu.memory_space<vmem>>, vector<1x1x256xf32>
    tpu.vector_store %arg4[%c0_15, %c0_16, %c0_17], %39 {strides = array<i32>} : memref<1x1x256xf32, #tpu.memory_space<vmem>>, vector<1x1x256xf32>,
    return
  }
  func.func @transform_0(%arg0: i32, %arg1: i32) -> (i32, i32, i32) {
    %c0_i32 = arith.constant 0 : i32
    %c0_i32_0 = arith.constant 0 : i32
    return %arg0, %c0_i32, %arg1 : i32, i32, i32
  }
  func.func @transform_1(%arg0: i32, %arg1: i32) -> (i32, i32, i32) {
    %c0_i32 = arith.constant 0 : i32
    %c0_i32_0 = arith.constant 0 : i32
    return %arg0, %c0_i32, %arg1 : i32, i32, i32
  }
  func.func @transform_2(%arg0: i32, %arg1: i32) -> (i32, i32, i32) {
    %c0_i32 = arith.constant 0 : i32
    %c0_i32_0 = arith.constant 0 : i32
    %c0_i32_1 = arith.constant 0 : i32
    return %arg0, %c0_i32, %c0_i32_0 : i32, i32, i32
  }
}

</mosaic_0001>

<llo_original>
// kernel: tpu_custom_call.1
$region0: #{tpu_custom_call.1}
  #allocation0 [shape = 'u32[]', space=smem, size = 0x4, offset = 0x4, fixed_abs, tag = 'smem constant byte address 0x4 - core index']
  #allocation1 [shape = 'u32[144,128]{1,0:T(1,128)}', space=vmem, size = 0x12000, scoped, tag = 'internal scratch']
  %s0 = inlined_call_operand.hbm [shape: f32[2,4,256], index: 0, kind: input, shape index: {}]
  %s1 = inlined_call_operand.hbm [shape: s32[2,1,256], index: 1, kind: input, shape index: {}]
  %s2 = inlined_call_operand.hbm [shape: f32[2,1,256], index: 2, kind: output, shape index: {}]
  %s3 = sld [smem:[#allocation0]]
  $region53: #{tpu_custom_call.1} parent=0
    _
  %s5 = ssub.s32 1, %s3
  %s6 = scalar_select 0, %s5, %s3
  $region1: #{tpu_custom_call.1} parent=0
    #allocation2 [shape = 'u8[8192]{0}', space=vmem, size = 0x2000, scoped, tag = 'input window, operand 0']
    #allocation3 [shape = 's32[2]{0}', space=sflag, size = 0x8, scoped, tag = 'scoped memory for tpu_custom_call.1']
    #allocation4 [shape = 's32[2]{0}', space=sflag, size = 0x8, scoped, tag = 'scoped memory for tpu_custom_call.1']
    #allocation5 [shape = 'u8[2048]{0}', space=vmem, size = 0x800, scoped, tag = 'input window, operand 1']
    #allocation6 [shape = 's32[2]{0}', space=sflag, size = 0x8, scoped, tag = 'scoped memory for tpu_custom_call.1']
    #allocation7 [shape = 'u8[2048]{0}', space=vmem, size = 0x800, scoped, tag = 'output window, operand 0']
    %7 = vsyncpa [#allocation3], 0
    %s8 = scalar_lea.sflag [#allocation3], 1
    %9 = vsyncpa %s8, 0
    %10 = vsyncpa [#allocation6], 0
    %s11 = scalar_lea.sflag [#allocation6], 1
    %12 = vsyncpa %s11, 0
    %13 = vsyncpa [#allocation4], 0
    %s14 = scalar_lea.sflag [#allocation4], 1
    %15 = vsyncpa %s14, 0
    loop: start=0, step=1, limit=4
    $region2: #{tpu_custom_call.1} parent=1 // loop_pre_header
      _
    $region3: #{tpu_custom_call.1} parent=1 // loop_header
      %s17 = sphi 0, %s21
      %p18 = scmp.ge.s32.totalorder %s17, 4
      %s24 = sphi 0, %s36
      %s25 = sphi 0, %s32
      %s26 = sphi 0, %s24
      %s27 = sphi 0, %s25
      %s28 = sphi 0, %s26
      %s29 = sphi 0, %s27
      %s41 = sphi 0, %s43
      %s44 = sphi 0, %s41
      %s45 = sphi 0, %s44
      %s61 = sphi 0, %s45
      %s69 = sphi 0, %s71
      %s72 = sphi 0, %s69
      %s73 = sphi 0, %s72
      %s89 = sphi 0, %s73
      %s95 = sphi 0, %s97
      %s98 = sphi 0, %s95
      %s99 = sphi 0, %s98
      %s115 = sphi 0, %s99
    $region4: #{tpu_custom_call.1} parent=1 // loop_header_branch
      %20 = sbr.rel (%p18) target = $region8
    $region5: #{tpu_custom_call.1} parent=1 // loop_body
      %s22 = ssub.s32 %s17, 1
      %s23 = ssub.s32 %s17, 2
      %s30 = sadd.s32 1, %s25
      %p31 = scmp.ge.s32.totalorder %s30, 1
      %s32 = scalar_select %p31, 0, %s30
      %s33 = sadd.s32 1, %s24
      %s34 = scalar_select %p31, %s33, %s24
      %p35 = scmp.ge.s32.totalorder %s34, 2
      %s36 = scalar_select %p35, 0, %s34
      %s37 = ssub.s32 %s24, %s36
      %s38 = ssub.s32 %s25, %s32
      %s39 = sor.u32 %s37, %s38
      %p40 = scmp.eq.s32.totalorder %s39, 0
      %s42 = sadd.s32 %s41, 1
      %s43 = scalar_select %p40, %s41, %s42
      %p46 = pneg %p40
      %p47 = scmp.eq.s32.totalorder %s17, 1
      %p48 = por %p46, %p47
      %p49 = scmp.ne.s32.totalorder %s41, %s44
      %p50 = scmp.eq.s32.totalorder %s17, 0
      %p51 = por %p49, %p50
      %p52 = scmp.ne.s32.totalorder %s41, %s44
      %p53 = scmp.eq.s32.totalorder %s22, 1
      %p54 = por %p52, %p53
      %p55 = scmp.ne.s32.totalorder %s44, %s45
      %p56 = scmp.eq.s32.totalorder %s22, 0
      %p57 = por %p55, %p56
      %p58 = scmp.ne.s32.totalorder %s44, %s45
      %p59 = scmp.eq.s32.totalorder %s23, 1
      %p60 = por %p58, %p59
      %p62 = scmp.ne.s32.totalorder %s45, %s61
      %p63 = scmp.eq.s32.totalorder %s23, 0
      %p64 = por %p62, %p63
      %s65 = ssub.s32 %s24, %s36
      %s66 = ssub.s32 %s25, %s32
      %s67 = sor.u32 %s65, %s66
      %p68 = scmp.eq.s32.totalorder %s67, 0
      %s70 = sadd.s32 %s69, 1
      %s71 = scalar_select %p68, %s69, %s70
      %p74 = pneg %p68
      %p75 = scmp.eq.s32.totalorder %s17, 1
      %p76 = por %p74, %p75
      %p77 = scmp.ne.s32.totalorder %s69, %s72
      %p78 = scmp.eq.s32.totalorder %s17, 0
      %p79 = por %p77, %p78
      %p80 = scmp.ne.s32.totalorder %s69, %s72
      %p81 = scmp.eq.s32.totalorder %s22, 1
      %p82 = por %p80, %p81
      %p83 = scmp.ne.s32.totalorder %s72, %s73
      %p84 = scmp.eq.s32.totalorder %s22, 0
      %p85 = por %p83, %p84
      %p86 = scmp.ne.s32.totalorder %s72, %s73
      %p87 = scmp.eq.s32.totalorder %s23, 1
      %p88 = por %p86, %p87
      %p90 = scmp.ne.s32.totalorder %s73, %s89
      %p91 = scmp.eq.s32.totalorder %s23, 0
      %p92 = por %p90, %p91
      %s93 = ssub.s32 %s24, %s36
      %p94 = scmp.eq.s32.totalorder %s93, 0
      %s96 = sadd.s32 %s95, 1
      %s97 = scalar_select %p94, %s95, %s96
      %p100 = pneg %p94
      %p101 = scmp.eq.s32.totalorder %s17, 1
      %p102 = por %p100, %p101
      %p103 = scmp.ne.s32.totalorder %s95, %s98
      %p104 = scmp.eq.s32.totalorder %s17, 0
      %p105 = por %p103, %p104
      %p106 = scmp.ne.s32.totalorder %s95, %s98
      %p107 = scmp.eq.s32.totalorder %s22, 1
      %p108 = por %p106, %p107
      %p109 = scmp.ne.s32.totalorder %s98, %s99
      %p110 = scmp.eq.s32.totalorder %s22, 0
      %p111 = por %p109, %p110
      %p112 = scmp.ne.s32.totalorder %s98, %s99
      %p113 = scmp.eq.s32.totalorder %s23, 1
      %p114 = por %p112, %p113
      %p116 = scmp.ne.s32.totalorder %s99, %s115
      %p117 = scmp.eq.s32.totalorder %s23, 0
      %p118 = por %p116, %p117
      %p119 = scmp.le.s32.totalorder 1, %s17
      %p120 = scmp.lt.s32.totalorder %s17, 3
      %p121 = pnand %p119, %p120
      %p122 = pneg %p121
      // Predicated region
      $region9: #{tpu_custom_call.1} parent=5 // pred_check
        _
      $region10: #{tpu_custom_call.1} parent=5 // pred_check_branch
        %124 = sbr.rel (%p121) target = $region12
      $region11: #{tpu_custom_call.1} parent=5 // pred_region
        %s125 = ssub.s32 %s17, 1
      $region12: #{tpu_custom_call.1} parent=5 // pred_fallthru
        _
      %p126 = scmp.lt.s32.totalorder %s17, 2
      // Predicated region
      $region13: #{tpu_custom_call.1} parent=5 // pred_check
        %p127 = pneg %p126
      $region14: #{tpu_custom_call.1} parent=5 // pred_check_branch
        %129 = sbr.rel (%p127) target = $region16
      $region15: #{tpu_custom_call.1} parent=5 // pred_region
        // Predicated region
        $region17: #{tpu_custom_call.1} parent=15 // pred_check
          %p130 = pneg %p51
        $region18: #{tpu_custom_call.1} parent=15 // pred_check_branch
          %132 = sbr.rel (%p130) target = $region20
        $region19: #{tpu_custom_call.1} parent=15 // pred_region
          %s133 = sand.u32 %s41, 1
          %s134 = scalar_lea.sflag [#allocation3], %s133
          %s135 = sand.u32 %s41, 1
          %s136 = smul.addr %s135, 8
          %s137 = scalar_lea.vmem [#allocation2], %s136
          %s138 = smul.u32 2, %s25
          %s140 = ssub.s32 128, 128
          %141 = vsyncadd %s134, %s140
          %s142 = smul.addr %s24, 2
          %s143 = sadd.s32 %s138, %s142
          %s144 = smul.addr %s143, 64
          %s145 = scalar_lea.hbm %s0, %s144
          %s147 = sshll.u32 %s137, 4
          %s148 = int_to_ptr.vmem [resolvable:$true] %s147
          %150 = dma.hbm_to_vmem [thread:$0]  %s145, 128, %s148, %s134
        $region20: #{tpu_custom_call.1} parent=15 // pred_fallthru
          _
        // Predicated region
        $region21: #{tpu_custom_call.1} parent=15 // pred_check
          %p151 = pneg %p79
        $region22: #{tpu_custom_call.1} parent=15 // pred_check_branch
          %153 = sbr.rel (%p151) target = $region24
        $region23: #{tpu_custom_call.1} parent=15 // pred_region
          %s154 = sand.u32 %s69, 1
          %s155 = scalar_lea.sflag [#allocation6], %s154
          %s156 = sand.u32 %s69, 1
          %s157 = smul.addr %s156, 2
          %s158 = scalar_lea.vmem [#allocation5], %s157
          %s159 = smul.u32 2, %s25
          %s161 = ssub.s32 32, 32
          %162 = vsyncadd %s155, %s161
          %s163 = smul.addr %s24, 2
          %s164 = sadd.s32 %s159, %s163
          %s165 = smul.addr %s164, 16
          %s166 = scalar_lea.hbm %s1, %s165
          %s168 = sshll.u32 %s158, 4
          %s169 = int_to_ptr.vmem [resolvable:$true] %s168
          %171 = dma.hbm_to_vmem [thread:$0]  %s166, 32, %s169, %s155
        $region24: #{tpu_custom_call.1} parent=15 // pred_fallthru
          _
      $region16: #{tpu_custom_call.1} parent=5 // pred_fallthru
        _
      %p172 = scmp.le.s32.totalorder 1, %s17
      %p173 = scmp.lt.s32.totalorder %s17, 3
      %p174 = pnand %p172, %p173
      %p175 = pneg %p174
      // Predicated region
      $region25: #{tpu_custom_call.1} parent=5 // pred_check
        _
      $region26: #{tpu_custom_call.1} parent=5 // pred_check_branch
        %177 = sbr.rel (%p174) target = $region28
      $region27: #{tpu_custom_call.1} parent=5 // pred_region
        %s178 = ssub.s32 %s17, 1
        %s179 = sand.u32 %s44, 1
        %s180 = scalar_lea.sflag [#allocation3], %s179
        %s181 = sand.u32 %s44, 1
        %s182 = smul.addr %s181, 8
        %s183 = scalar_lea.vmem [#allocation2], %s182
        // Predicated region
        $region29: #{tpu_custom_call.1} parent=27 // pred_check
          %p184 = pneg %p57
        $region30: #{tpu_custom_call.1} parent=27 // pred_check_branch
          %186 = sbr.rel (%p184) target = $region32
        $region31: #{tpu_custom_call.1} parent=27 // pred_region
          %187 = dma.done %s180, 128
        $region32: #{tpu_custom_call.1} parent=27 // pred_fallthru
          _
        %s188 = sand.u32 %s72, 1
        %s189 = scalar_lea.sflag [#allocation6], %s188
        %s190 = sand.u32 %s72, 1
        %s191 = smul.addr %s190, 2
        %s192 = scalar_lea.vmem [#allocation5], %s191
        // Predicated region
        $region33: #{tpu_custom_call.1} parent=27 // pred_check
          %p193 = pneg %p85
        $region34: #{tpu_custom_call.1} parent=27 // pred_check_branch
          %195 = sbr.rel (%p193) target = $region36
        $region35: #{tpu_custom_call.1} parent=27 // pred_region
          %196 = dma.done %s189, 32
        $region36: #{tpu_custom_call.1} parent=27 // pred_fallthru
          _
        %s197 = sand.u32 %s44, 1
        %s198 = scalar_lea.sflag [#allocation3], %s197
        %s199 = sand.u32 %s44, 1
        %s200 = smul.addr %s199, 8
        %s201 = scalar_lea.vmem [#allocation2], %s200
        %p202 = pneg %p57
        %p203 = pneg %p54
        %s204 = sand.u32 %s72, 1
        %s205 = scalar_lea.sflag [#allocation6], %s204
        %s206 = sand.u32 %s72, 1
        %s207 = smul.addr %s206, 2
        %s208 = scalar_lea.vmem [#allocation5], %s207
        %p209 = pneg %p85
        %p210 = pneg %p82
        %p211 = pneg %p111
        %p212 = pneg %p108
        %s213 = sand.u32 %s98, 1
        %s214 = scalar_lea.sflag [#allocation4], %s213
        %s215 = sand.u32 %s98, 1
        %s216 = smul.addr %s215, 2
        %s217 = scalar_lea.vmem [#allocation7], %s216
        %s218 = smul.u32 2, %s27
        %s219 = smul.u32 2, %s27
        %p220 = scmp.eq.s32.totalorder %s27, 0
        // Predicated region
        $region37: #{tpu_custom_call.1} parent=27 // pred_check
          %p221 = pneg %p220
        $region38: #{tpu_custom_call.1} parent=27 // pred_check_branch
          %223 = sbr.rel (%p221) target = $region40
        $region39: #{tpu_custom_call.1} parent=27 // pred_region
          %v224 = vlaneseq
          %vm225 = vcmp.ge.s32.totalorder %v224, 0
          %vm226 = vcmp.lt.s32.totalorder %v224, 256
          %vm227 = vmand %vm225, %vm226
          %228 = vst.msk [vmem:[%s217] sm:$0x3] %vm227, 0.0
        $region40: #{tpu_custom_call.1} parent=27 // pred_fallthru
          _
        %v229 = vld [vmem:[%s183] sm:$0xff]
        %v230 = vld [vmem:[%s192] sm:$0x3]
        %s231 = smul.u32 %s27, 256
        %v232 = vlaneseq
        %v233 = vand.u32 %v232, 127
        %v234 = vadd.s32 %v233, 128
        %v235 = vstv %s231
        %v236 = vadd.s32 %v235, %v233
        %v237 = vadd.s32 %v235, %v234
        %vm238 = vcmp.lt.s32.totalorder %v236, 256
        %vm239 = vcmp.lt.s32.totalorder %v237, 256
        %vm240 = vcmp.ne.s32.totalorder %v230, 255
        %v241 = vsel %vm240, 1, 0
        %v242 = vlaneseq
        %v243 = vshrl.u32 %v242, 7
        %v244 = vsub.s32 0, %v243
        %v245 = vrot.slane %v241, %v244
        %v246 = vlaneseq
        %v247 = vshrl.u32 %v246, 7
        %v248 = vsub.s32 1, %v247
        %v249 = vrot.slane %v241, %v248
        %vm250 = vcmp.ne.s32.totalorder %v245, 0
        %vm251 = vcmp.ne.s32.totalorder %v249, 0
        %vm252 = vmand %vm238, %vm250
        %vm253 = vmand %vm239, %vm251
        %v255 = vcombine.high %v229, %v229
        %vm257 = vcmask 1043456
        %v258 = vsel %vm257, %v229, -inf
        %v259 = vrot.slane %v258, 4
        %v260 = vmax.f32 %v258, %v259
        %v261 = vrot.slane %v260, 2
        %v262 = vmax.f32 %v260, %v261
        %v263 = vrot.slane %v262, 1
        %v264 = vmax.f32 %v262, %v263
        %v265 = vsel %vm257, %v255, -inf
        %v266 = vrot.slane %v265, 4
        %v267 = vmax.f32 %v265, %v266
        %v268 = vrot.slane %v267, 2
        %v269 = vmax.f32 %v267, %v268
        %v270 = vrot.slane %v269, 1
        %v271 = vmax.f32 %v269, %v270
        %v274 = vcombine.low %v264, %v271
        %v276 = vsub.f32 %v229, %v274
        %v277 = vmul.f32 %v276, 1.442695
        %v278 = vpow.pop %v277
        %v280 = vcombine.high %v278, %v278
        %v282 = vsel %vm257, %v278, 0.0
        %v283 = vrot.slane %v282, 4
        %v284 = vadd.f32 %v282, %v283
        %v285 = vrot.slane %v284, 2
        %v286 = vadd.f32 %v284, %v285
        %v287 = vrot.slane %v286, 1
        %v288 = vadd.f32 %v286, %v287
        %v289 = vsel %vm257, %v280, 0.0
        %v290 = vrot.slane %v289, 4
        %v291 = vadd.f32 %v289, %v290
        %v292 = vrot.slane %v291, 2
        %v293 = vadd.f32 %v291, %v292
        %v294 = vrot.slane %v293, 1
        %v295 = vadd.f32 %v293, %v294
        %v296 = vlog2.pop %v288
        %v297 = vmul.f32 %v296, 0.6931472
        %v298 = vlog2.pop %v295
        %v299 = vmul.f32 %v298, 0.6931472
        %v300 = vadd.f32 %v264, %v297
        %v301 = vadd.f32 %v271, %v299
        %v302 = vlaneseq
        %v303 = vshrl.u32 %v302, 7
        %v304 = vlaneseq
        %v305 = vshrl.u32 %v304, 7
        %v306 = vsub.s32 0, %v305
        %v307 = vrot.slane %v230, %v306
        %v308 = vlaneseq
        %v309 = vshrl.u32 %v308, 7
        %v310 = vsub.s32 1, %v309
        %v311 = vrot.slane %v230, %v310
        %vm312 = vcmp.eq.s32.totalorder %v303, %v307
        %vm313 = vcmp.eq.s32.totalorder %v303, %v311
        %v314 = vsel %vm312, %v229, 0.0
        %v315 = vsel %vm313, %v255, 0.0
        %v316 = vsel %vm257, %v314, 0.0
        %v317 = vrot.slane %v316, 4
        %v318 = vadd.f32 %v316, %v317
        %v319 = vrot.slane %v318, 2
        %v320 = vadd.f32 %v318, %v319
        %v321 = vrot.slane %v320, 1
        %v322 = vadd.f32 %v320, %v321
        %v323 = vsel %vm257, %v315, 0.0
        %v324 = vrot.slane %v323, 4
        %v325 = vadd.f32 %v323, %v324
        %v326 = vrot.slane %v325, 2
        %v327 = vadd.f32 %v325, %v326
        %v328 = vrot.slane %v327, 1
        %v329 = vadd.f32 %v327, %v328
        %v330 = vsub.f32 %v300, %v322
        %v331 = vsub.f32 %v301, %v329
        %v332 = vsel %vm252, %v330, 0.0
        %v333 = vsel %vm253, %v331, 0.0
        %v334 = vld [vmem:[%s217] sm:$0x3]
        %v337 = vcombine.low %v332, %v333
        %v339 = vunpack.c.l.s4 1966171168
        %v340 = vunpack.c.0.s8 %v339
        %v341 = vlaneseq
        %v342 = vshrl.u32 %v341, 7
        %v343 = vsub.s32 %v340, %v342
        %v344 = vrot.slane %v337, %v343
        %v346 = vunpack.c.l.s4 1966171168
        %v347 = vunpack.c.0.s8 %v346
        %v348 = vlaneseq
        %v349 = vshrl.u32 %v348, 7
        %v350 = vsub.s32 %v347, %v349
        %v351 = vrot.slane %v344, %v350
        %v353 = vadd.f32 %v334, %v351
        %v354 = vlaneseq
        %vm355 = vcmp.ge.s32.totalorder %v354, 0
        %vm356 = vcmp.lt.s32.totalorder %v354, 256
        %vm357 = vmand %vm355, %vm356
        %358 = vst.msk [vmem:[%s217] sm:$0x3] %vm357, %v353
        %s359 = sand.u32 %s98, 1
        %s360 = scalar_lea.sflag [#allocation4], %s359
        %s361 = sand.u32 %s98, 1
        %s362 = smul.addr %s361, 2
        %s363 = scalar_lea.vmem [#allocation7], %s362
        // Predicated region
        $region41: #{tpu_custom_call.1} parent=27 // pred_check
          %p364 = pneg %p108
        $region42: #{tpu_custom_call.1} parent=27 // pred_check_branch
          %366 = sbr.rel (%p364) target = $region44
        $region43: #{tpu_custom_call.1} parent=27 // pred_region
          %s368 = ssub.s32 32, 32
          %369 = vsyncadd %s360, %s368
          %s370 = smul.addr %s26, 2
          %s371 = smul.addr %s370, 16
          %s372 = scalar_lea.hbm %s2, %s371
          %s374 = sshll.u32 %s363, 4
          %s375 = int_to_ptr.vmem [resolvable:$true] %s374
          %377 = dma.vmem_to_hbm [thread:$0]  %s375, 32, %s372, %s360
        $region44: #{tpu_custom_call.1} parent=27 // pred_fallthru
          _
      $region28: #{tpu_custom_call.1} parent=5 // pred_fallthru
        _
      %p378 = scmp.le.s32.totalorder 2, %s17
      // Predicated region
      $region45: #{tpu_custom_call.1} parent=5 // pred_check
        %p379 = pneg %p378
      $region46: #{tpu_custom_call.1} parent=5 // pred_check_branch
        %381 = sbr.rel (%p379) target = $region48
      $region47: #{tpu_custom_call.1} parent=5 // pred_region
        %s382 = ssub.s32 %s17, 2
        // Predicated region
        $region49: #{tpu_custom_call.1} parent=47 // pred_check
          %p383 = pneg %p114
        $region50: #{tpu_custom_call.1} parent=47 // pred_check_branch
          %385 = sbr.rel (%p383) target = $region52
        $region51: #{tpu_custom_call.1} parent=47 // pred_region
          %s386 = sand.u32 %s99, 1
          %s387 = scalar_lea.sflag [#allocation4], %s386
          %s388 = sand.u32 %s99, 1
          %s389 = smul.addr %s388, 2
          %s390 = scalar_lea.vmem [#allocation7], %s389
          %391 = dma.done %s387, 32
        $region52: #{tpu_custom_call.1} parent=47 // pred_fallthru
          _
      $region48: #{tpu_custom_call.1} parent=5 // pred_fallthru
        _
    $region6: #{tpu_custom_call.1} parent=1 // loop_footer
      %s21 = sadd.s32 1, %s17
    $region7: #{tpu_custom_call.1} parent=1 // loop_footer_branch
      %16 = sbr.rel target = $region3
    $region8: #{tpu_custom_call.1} parent=1 // loop_exit
      _
    %392 = vsyncpa [#allocation3], 1
    %s393 = scalar_lea.sflag [#allocation3], 1
    %394 = vsyncpa %s393, 1
    %395 = vsyncpa [#allocation6], 1
    %s396 = scalar_lea.sflag [#allocation6], 1
    %397 = vsyncpa %s396, 1
    %398 = vsyncpa [#allocation4], 1
    %s399 = scalar_lea.sflag [#allocation4], 1
    %400 = vsyncpa %s399, 1

</llo_original>
